<compile_context>
chip_gen: v6e
topology: v6e:2x2x1
jax: 0.10.0
libtpu: 0.0.40
codegen_flags: <defaults>
</compile_context>

<pallas_src>
import functools

import jax
import jax.numpy as jnp
import numpy as np
from jax import lax
from jax.experimental import pallas as pl
from jax.experimental.pallas import tpu as pltpu


def _freq_cyclic_sum(y, F, T, FT):
    """Per-lane sum of y over all F cyclic frequency shifts (lane period T).

    Every lane ends up holding sum_f y[row, f, t] for its own time position t,
    via a roll-and-add doubling tree (log2(F)+popcount(F)-1 rolls, any F)."""
    d = y            # running R_p = sum of p consecutive cyclic freq shifts
    p = 1
    res = None
    cov = 0
    rem = F
    while rem:
        if rem & 1:
            if res is None:
                res, cov = d, p
            else:
                res = res + pltpu.roll(d, shift=(cov * T) % FT, axis=1)
                cov += p
        rem >>= 1
        if rem:
            d = d + pltpu.roll(d, shift=(p * T) % FT, axis=1)
            p *= 2
    return res


def broadcast_block_kernel(x_ref, wf_ref, ssn_s_ref, ssn_b_ref,
                           wt_ref, bn_b_ref, pwc_ref, o_ref, *, C, F, T):
    # Block = NB batch elements, batch-major rows: row = b*C + c, lane = f*T + t.
    x = x_ref[...].astype(jnp.float32)                  # (R, FT)
    R, FT = x.shape
    wf = wf_ref[...].astype(jnp.float32)                # (R, K) freq taps (per row)
    wt = wt_ref[...].astype(jnp.float32)                # (R, K) temporal taps * bn_s / F
    pwc = pwc_ref[...].astype(jnp.float32)              # (R, C) pointwise roll columns
    K = wf.shape[1]
    pad = (K - 1) // 2

    # Hoisted per-lane positions, reused by every tap mask.
    idx = lax.broadcasted_iota(jnp.int32, (R, FT), 1)   # flat lane index i = f*T + t
    tpos = idx % T                                      # time position t

    def shifted(v, s):
        # out[., i] = v[., (i + s) % FT]
        return pltpu.roll(v, shift=(-s) % FT, axis=1)

    # --- frequency depthwise conv (K x 1), groups=C, no bias ---
    # A freq shift of d is a flat lane shift of d*T; single-sided validity per tap
    # (only one bound can fail for a fixed-sign offset).  Center tap has no mask.
    y = wf[:, pad:pad + 1] * x
    for k in range(K):
        d = k - pad
        if d == 0:
            continue
        valid = (idx < FT - d * T) if d > 0 else (idx >= -d * T)
        y = y + wf[:, k:k + 1] * jnp.where(valid, shifted(x, d * T), 0.0)

    # --- SubSpectralNorm: eval BN folded to per-(row, f) affine (pre-tiled over t) ---
    y = y * ssn_s_ref[...] + ssn_b_ref[...]
    aux = y

    # --- frequency sum, kept lane-dense (1/F is folded into the temporal taps) ---
    s = _freq_cyclic_sum(y, F, T, FT)                   # period-T in lanes

    # --- temporal depthwise conv (1 x K) with folded BN-scale/F taps, + BN shift ---
    z = wt[:, pad:pad + 1] * s
    for k in range(K):
        d = k - pad
        if d == 0:
            continue
        valid = (tpos < T - d) if d > 0 else (tpos >= -d)
        z = z + wt[:, k:k + 1] * jnp.where(valid, shifted(s, d), 0.0)
    z = z + bn_b_ref[...]

    # --- swish / SiLU (sigmoid lands on the EUP slot) ---
    z = z * jax.nn.sigmoid(z)

    # --- pointwise 1x1 conv: group-cyclic channel mix via sublane rolls (XLU) ---
    # out[b, c] = sum_r pwc[c, r] * z[b, (c - r) % C].  The group-cyclic shift by r
    # is built from two full-axis sublane rolls + a per-row select, so the shuffle
    # work sits on the XLU instead of value-level sublane-broadcast relayouts.
    # (C=4: the MXU would be <0.1% utilized and pay push/pop latency; skip it.)
    rowc = lax.broadcasted_iota(jnp.int32, (R, FT), 0) % C
    pw = pwc[:, 0:1] * z
    for r in range(1, C):
        hi = pltpu.roll(z, shift=r, axis=0)             # correct batch when c >= r
        lo = pltpu.roll(z, shift=(r - C) % R, axis=0)   # correct batch when c <  r
        pw = pw + pwc[:, r:r + 1] * jnp.where(rowc >= r, hi, lo)

    # TODO(synk): nn.Dropout omitted (inference mode -> identity; no RNG mask here).
    # trans_conv is None (Cin == Cout) -> identity + auxiliary + pointwise branch.
    out = x + aux + pw                                  # pw is already freq-tiled
    o_ref[...] = jnp.maximum(out, 0.0).astype(o_ref.dtype)


def _pick_batch_block(N, C, FT, itemsize, target_bytes=1 << 20):
    """Largest NB dividing N whose input block is <= ~target_bytes (>= 1)."""
    per_batch = C * FT * itemsize
    nb = int(max(1, min(N, target_bytes // per_batch)))
    while N % nb:
        nb -= 1
    return nb


def broadcast_block(x, w_freq, ssn_scale, ssn_shift, w_temp, bn2_scale, bn2_shift, w_pw):
    N, C, F, T = x.shape
    FT = F * T
    K = w_freq.shape[1]
    assert K % 2 == 1, "odd kernel size assumed (symmetric 'same' padding)"
    assert FT % 128 == 0, "F*T must be a multiple of 128 for lane-dense blocks"

    NB = _pick_batch_block(N, C, FT, jnp.dtype(x.dtype).itemsize)
    R = NB * C                                    # rows per grid step (sublane dim)
    assert (R % 8 == 0) or (NB == N), "row block must fill sublanes or cover all rows"
    steps = N // NB

    # Lane- and sublane-dense repack (pure metadata reshape): (N,C,F,T) -> (N*C, F*T).
    x_flat = x.reshape(N * C, FT)

    # Per-row constants, tiled host-side to the (NB*C)-row block layout (resident).
    ssn_s_rows = jnp.tile(
        jnp.broadcast_to(ssn_scale[:, :, None], (C, F, T)).reshape(C, FT), (NB, 1))
    ssn_b_rows = jnp.tile(
        jnp.broadcast_to(ssn_shift[:, :, None], (C, F, T)).reshape(C, FT), (NB, 1))
    wf_rows = jnp.tile(w_freq, (NB, 1))                               # (R, K)
    # Fold the temporal BN scale and the 1/F mean factor into the temporal taps.
    wt_rows = jnp.tile(w_temp * bn2_scale.reshape(C, 1) / F, (NB, 1))  # (R, K)
    bnb_rows = jnp.tile(bn2_shift.reshape(C, 1), (NB, 1))             # (R, 1)
    # Pointwise 1x1 conv repacked as per-roll weight columns: pwc[c, r] = w_pw[c, (c-r)%C].
    ci = jnp.arange(C)
    pwc = w_pw[ci[:, None], (ci[:, None] - ci[None, :]) % C]          # (C, C)
    pwc_rows = jnp.tile(pwc, (NB, 1))                                 # (R, C)

    row_map = lambda i: (i, 0)
    const_map = lambda i: (0, 0)
    # Only split across v7x's two TensorCores once each core gets >= 2 sizable steps.
    dims = ("parallel",) if steps >= 4 else ("arbitrary",)

    out_flat = pl.pallas_call(
        functools.partial(broadcast_block_kernel, C=C, F=F, T=T),
        out_shape=jax.ShapeDtypeStruct((N * C, FT), x.dtype),
        grid=(steps,),
        in_specs=[
            pl.BlockSpec((R, FT), row_map),     # x rows (per-step block)
            pl.BlockSpec((R, K), const_map),    # freq dw taps (resident)
            pl.BlockSpec((R, FT), const_map),   # SSN scale (resident)
            pl.BlockSpec((R, FT), const_map),   # SSN shift (resident)
            pl.BlockSpec((R, K), const_map),    # temporal taps * bn_scale / F
            pl.BlockSpec((R, 1), const_map),    # folded BN shift
            pl.BlockSpec((R, C), const_map),    # pointwise roll-weight columns
        ],
        out_specs=pl.BlockSpec((R, FT), row_map),
        compiler_params=pltpu.CompilerParams(dimension_semantics=dims),
    )(x_flat, wf_rows, ssn_s_rows, ssn_b_rows, wt_rows, bnb_rows, pwc_rows)
    return out_flat.reshape(N, C, F, T)


# ---------------- pure-JAX reference (independent implementation) ----------------
def ref_forward(x, w_freq, ssn_scale, ssn_shift, w_temp, bn2_s, bn2_b, w_pw, K):
    N, C, F, T = x.shape
    p = (K - 1) // 2
    dn = ('NCHW', 'OIHW', 'NCHW')
    y = lax.conv_general_dilated(x, w_freq.reshape(C, 1, K, 1), (1, 1),
                                 ((p, p), (0, 0)), dimension_numbers=dn,
                                 feature_group_count=C)
    y = y * ssn_scale[None, :, :, None] + ssn_shift[None, :, :, None]
    aux = y
    m = y.mean(axis=2, keepdims=True)
    z = lax.conv_general_dilated(m, w_temp.reshape(C, 1, 1, K), (1, 1),
                                 ((0, 0), (p, p)), dimension_numbers=dn,
                                 feature_group_count=C)
    z = z * bn2_s.reshape(1, C, 1, 1) + bn2_b.reshape(1, C, 1, 1)
    z = z * jax.nn.sigmoid(z)
    z = lax.conv_general_dilated(z, w_pw.reshape(C, C, 1, 1), (1, 1),
                                 ((0, 0), (0, 0)), dimension_numbers=dn)
    return jnp.maximum(x + aux + z, 0.0)


if __name__ == "__main__":
    # Module config: in_channels == out_channels == 4 (trans_conv is None),
    # kernel_size=3, dropout_rate=0.1 (eval -> identity), sub_bands=4.
    N, C, F, T = 2, 4, 16, 16
    K, S = 3, 4
    eps = 1e-5

    key = jax.random.PRNGKey(0)
    ks = jax.random.split(key, 12)

    x = jax.random.normal(ks[0], (N, C, F, T), jnp.float32)

    # conv weights (PyTorch shapes: (C,1,K,1), (C,1,1,K), (C,C,1,1) -> flattened)
    w_freq = 0.3 * jax.random.normal(ks[1], (C, K), jnp.float32)
    w_temp = 0.3 * jax.random.normal(ks[2], (C, K), jnp.float32)
    w_pw = 0.3 * jax.random.normal(ks[3], (C, C), jnp.float32)

    # SubSpectralNorm BN params (C*S,) -> fold into per-(channel, freq) affine (C, F)
    gamma1 = 1.0 + 0.1 * jax.random.normal(ks[4], (C * S,), jnp.float32)
    beta1 = 0.1 * jax.random.normal(ks[5], (C * S,), jnp.float32)
    rmean1 = 0.1 * jax.random.normal(ks[6], (C * S,), jnp.float32)
    rvar1 = 1.0 + 0.1 * jax.random.uniform(ks[7], (C * S,), jnp.float32)
    s1 = gamma1 / jnp.sqrt(rvar1 + eps)
    b1 = beta1 - rmean1 * s1
    ssn_scale = jnp.repeat(s1.reshape(C, S), F // S, axis=1)   # (C, F)
    ssn_shift = jnp.repeat(b1.reshape(C, S), F // S, axis=1)   # (C, F)

    # temp_dw_conv BN params (C,) -> folded affine
    gamma2 = 1.0 + 0.1 * jax.random.normal(ks[8], (C,), jnp.float32)
    beta2 = 0.1 * jax.random.normal(ks[9], (C,), jnp.float32)
    rmean2 = 0.1 * jax.random.normal(ks[10], (C,), jnp.float32)
    rvar2 = 1.0 + 0.1 * jax.random.uniform(ks[11], (C,), jnp.float32)
    s2 = gamma2 / jnp.sqrt(rvar2 + eps)
    b2 = beta2 - rmean2 * s2
    bn2_scale = s2.reshape(C, 1)
    bn2_shift = b2.reshape(C, 1)

    out = broadcast_block(x, w_freq, ssn_scale, ssn_shift, w_temp,
                          bn2_scale, bn2_shift, w_pw)
    out = jax.block_until_ready(out)

    ref = ref_forward(x, w_freq, ssn_scale, ssn_shift, w_temp, s2, b2, w_pw, K)
    ref = jax.block_until_ready(ref)

    np.testing.assert_allclose(np.asarray(out), np.asarray(ref), rtol=1e-5, atol=1e-5)
    print("KERNEL_OK")
</pallas_src>

<mosaic_0001>
module attributes {stable_mosaic.version = 11 : i64} {
  func.func @broadcast_block_kernel(%arg0: i32, %arg1: memref<8x256xf32, #tpu.memory_space<vmem>>, %arg2: memref<8x3xf32, #tpu.memory_space<vmem>>, %arg3: memref<8x256xf32, #tpu.memory_space<vmem>>, %arg4: memref<8x256xf32, #tpu.memory_space<vmem>>, %arg5: memref<8x3xf32, #tpu.memory_space<vmem>>, %arg6: memref<8x1xf32, #tpu.memory_space<vmem>>, %arg7: memref<8x4xf32, #tpu.memory_space<vmem>>, %arg8: memref<8x256xf32, #tpu.memory_space<vmem>>) attributes {dimension_semantics = [#tpu.dimension_semantics<arbitrary>], iteration_bounds = array<i64: 1>, scalar_prefetch = 0 : i64, scratch_operands = 0 : i64, tpu.core_type = #tpu.core_type<tc>, window_params = [{transform_indices = @transform_0, window_bounds = array<i64: 8, 256>}, {pipeline_mode = #tpu.pipeline_mode<synchronous>, transform_indices = @transform_1, window_bounds = array<i64: 8, 3>}, {pipeline_mode = #tpu.pipeline_mode<synchronous>, transform_indices = @transform_2, window_bounds = array<i64: 8, 256>}, {pipeline_mode = #tpu.pipeline_mode<synchronous>, transform_indices = @transform_3, window_bounds = array<i64: 8, 256>}, {pipeline_mode = #tpu.pipeline_mode<synchronous>, transform_indices = @transform_4, window_bounds = array<i64: 8, 3>}, {pipeline_mode = #tpu.pipeline_mode<synchronous>, transform_indices = @transform_5, window_bounds = array<i64: 8, 1>}, {pipeline_mode = #tpu.pipeline_mode<synchronous>, transform_indices = @transform_6, window_bounds = array<i64: 8, 4>}, {transform_indices = @transform_7, window_bounds = array<i64: 8, 256>}]} {
    %c0 = arith.constant 0 : index
    %c0_0 = arith.constant 0 : index
    %0 = vector.load %arg1[%c0, %c0_0] : memref<8x256xf32, #tpu.memory_space<vmem>>, vector<8x256xf32>
    %c0_1 = arith.constant 0 : index
    %c0_2 = arith.constant 0 : index
    %1 = vector.load %arg2[%c0_1, %c0_2] : memref<8x3xf32, #tpu.memory_space<vmem>>, vector<8x3xf32>
    %c0_3 = arith.constant 0 : index
    %c0_4 = arith.constant 0 : index
    %2 = vector.load %arg5[%c0_3, %c0_4] : memref<8x3xf32, #tpu.memory_space<vmem>>, vector<8x3xf32>
    %c0_5 = arith.constant 0 : index
    %c0_6 = arith.constant 0 : index
    %3 = vector.load %arg7[%c0_5, %c0_6] : memref<8x4xf32, #tpu.memory_space<vmem>>, vector<8x4xf32>
    %4 = tpu.iota {dimensions = array<i32: 1>} : vector<8x256xi32>
    %c16_i32 = arith.constant 16 : i32
    %c0_i32 = arith.constant 0 : i32
    %5 = arith.cmpi eq, %c16_i32, %c0_i32 : i32
    %c1_i32 = arith.constant 1 : i32
    %6 = arith.select %5, %c1_i32, %c16_i32 : i32
    %7 = vector.broadcast %6 : i32 to vector<8x256xi32>
    %8 = arith.remsi %4, %7 : vector<8x256xi32>
    %c0_i32_7 = arith.constant 0 : i32
    %9 = vector.broadcast %c0_i32_7 : i32 to vector<8x256xi32>
    %10 = arith.cmpi ne, %8, %9 : vector<8x256xi32>
    %c0_i32_8 = arith.constant 0 : i32
    %11 = vector.broadcast %c0_i32_8 : i32 to vector<8x256xi32>
    %12 = arith.cmpi slt, %8, %11 : vector<8x256xi32>
    %c0_i32_9 = arith.constant 0 : i32
    %13 = arith.cmpi slt, %6, %c0_i32_9 : i32
    %14 = vector.broadcast %13 : i1 to vector<8x256xi1>
    %15 = vector.broadcast %14 : vector<8x256xi1> to vector<8x256xi1>
    %16 = arith.xori %12, %15 : vector<8x256xi1>
    %17 = arith.andi %16, %10 : vector<8x256xi1>
    %18 = vector.broadcast %6 : i32 to vector<8x256xi32>
    %19 = arith.addi %8, %18 : vector<8x256xi32>
    %20 = arith.select %17, %19, %8 : vector<8x256xi1>, vector<8x256xi32>
    %21 = vector.extract_strided_slice %1 {offsets = [0, 1], sizes = [8, 1], strides = [1, 1]} : vector<8x3xf32> to vector<8x1xf32>
    %22 = vector.broadcast %21 : vector<8x1xf32> to vector<8x256xf32>
    %23 = arith.mulf %22, %0 : vector<8x256xf32>
    %c16_i32_10 = arith.constant 16 : i32
    %24 = vector.broadcast %c16_i32_10 : i32 to vector<8x256xi32>
    %25 = arith.cmpi sge, %4, %24 : vector<8x256xi32>
    %26 = vector.extract_strided_slice %1 {offsets = [0, 0], sizes = [8, 1], strides = [1, 1]} : vector<8x3xf32> to vector<8x1xf32>
    %c16_i32_11 = arith.constant 16 : i32
    %27 = tpu.dynamic_rotate %0 by %c16_i32_11 dim 1 : vector<8x256xf32>, i32 -> vector<8x256xf32>
    %cst = arith.constant 0.000000e+00 : f32
    %28 = vector.broadcast %cst : f32 to vector<8x256xf32>
    %29 = arith.select %25, %27, %28 : vector<8x256xi1>, vector<8x256xf32>
    %30 = vector.broadcast %26 : vector<8x1xf32> to vector<8x256xf32>
    %31 = arith.mulf %30, %29 : vector<8x256xf32>
    %32 = arith.addf %23, %31 : vector<8x256xf32>
    %c240_i32 = arith.constant 240 : i32
    %33 = vector.broadcast %c240_i32 : i32 to vector<8x256xi32>
    %34 = arith.cmpi slt, %4, %33 : vector<8x256xi32>
    %35 = vector.extract_strided_slice %1 {offsets = [0, 2], sizes = [8, 1], strides = [1, 1]} : vector<8x3xf32> to vector<8x1xf32>
    %c240_i32_12 = arith.constant 240 : i32
    %36 = tpu.dynamic_rotate %0 by %c240_i32_12 dim 1 : vector<8x256xf32>, i32 -> vector<8x256xf32>
    %cst_13 = arith.constant 0.000000e+00 : f32
    %37 = vector.broadcast %cst_13 : f32 to vector<8x256xf32>
    %38 = arith.select %34, %36, %37 : vector<8x256xi1>, vector<8x256xf32>
    %39 = vector.broadcast %35 : vector<8x1xf32> to vector<8x256xf32>
    %40 = arith.mulf %39, %38 : vector<8x256xf32>
    %41 = arith.addf %32, %40 : vector<8x256xf32>
    %c0_14 = arith.constant 0 : index
    %c0_15 = arith.constant 0 : index
    %42 = vector.load %arg3[%c0_14, %c0_15] : memref<8x256xf32, #tpu.memory_space<vmem>>, vector<8x256xf32>
    %43 = arith.mulf %41, %42 : vector<8x256xf32>
    %c0_16 = arith.constant 0 : index
    %c0_17 = arith.constant 0 : index
    %44 = vector.load %arg4[%c0_16, %c0_17] : memref<8x256xf32, #tpu.memory_space<vmem>>, vector<8x256xf32>
    %45 = arith.addf %43, %44 : vector<8x256xf32>
    %c16_i32_18 = arith.constant 16 : i32
    %46 = tpu.dynamic_rotate %45 by %c16_i32_18 dim 1 : vector<8x256xf32>, i32 -> vector<8x256xf32>
    %47 = arith.addf %45, %46 : vector<8x256xf32>
    %c32_i32 = arith.constant 32 : i32
    %48 = tpu.dynamic_rotate %47 by %c32_i32 dim 1 : vector<8x256xf32>, i32 -> vector<8x256xf32>
    %49 = arith.addf %47, %48 : vector<8x256xf32>
    %c64_i32 = arith.constant 64 : i32
    %50 = tpu.dynamic_rotate %49 by %c64_i32 dim 1 : vector<8x256xf32>, i32 -> vector<8x256xf32>
    %51 = arith.addf %49, %50 : vector<8x256xf32>
    %c128_i32 = arith.constant 128 : i32
    %52 = tpu.dynamic_rotate %51 by %c128_i32 dim 1 : vector<8x256xf32>, i32 -> vector<8x256xf32>
    %53 = arith.addf %51, %52 : vector<8x256xf32>
    %54 = vector.extract_strided_slice %2 {offsets = [0, 1], sizes = [8, 1], strides = [1, 1]} : vector<8x3xf32> to vector<8x1xf32>
    %55 = vector.broadcast %54 : vector<8x1xf32> to vector<8x256xf32>
    %56 = arith.mulf %55, %53 : vector<8x256xf32>
    %c1_i32_19 = arith.constant 1 : i32
    %57 = vector.broadcast %c1_i32_19 : i32 to vector<8x256xi32>
    %58 = arith.cmpi sge, %20, %57 : vector<8x256xi32>
    %59 = vector.extract_strided_slice %2 {offsets = [0, 0], sizes = [8, 1], strides = [1, 1]} : vector<8x3xf32> to vector<8x1xf32>
    %c1_i32_20 = arith.constant 1 : i32
    %60 = tpu.dynamic_rotate %53 by %c1_i32_20 dim 1 : vector<8x256xf32>, i32 -> vector<8x256xf32>
    %cst_21 = arith.constant 0.000000e+00 : f32
    %61 = vector.broadcast %cst_21 : f32 to vector<8x256xf32>
    %62 = arith.select %58, %60, %61 : vector<8x256xi1>, vector<8x256xf32>
    %63 = vector.broadcast %59 : vector<8x1xf32> to vector<8x256xf32>
    %64 = arith.mulf %63, %62 : vector<8x256xf32>
    %65 = arith.addf %56, %64 : vector<8x256xf32>
    %c15_i32 = arith.constant 15 : i32
    %66 = vector.broadcast %c15_i32 : i32 to vector<8x256xi32>
    %67 = arith.cmpi slt, %20, %66 : vector<8x256xi32>
    %68 = vector.extract_strided_slice %2 {offsets = [0, 2], sizes = [8, 1], strides = [1, 1]} : vector<8x3xf32> to vector<8x1xf32>
    %c255_i32 = arith.constant 255 : i32
    %69 = tpu.dynamic_rotate %53 by %c255_i32 dim 1 : vector<8x256xf32>, i32 -> vector<8x256xf32>
    %cst_22 = arith.constant 0.000000e+00 : f32
    %70 = vector.broadcast %cst_22 : f32 to vector<8x256xf32>
    %71 = arith.select %67, %69, %70 : vector<8x256xi1>, vector<8x256xf32>
    %72 = vector.broadcast %68 : vector<8x1xf32> to vector<8x256xf32>
    %73 = arith.mulf %72, %71 : vector<8x256xf32>
    %74 = arith.addf %65, %73 : vector<8x256xf32>
    %c0_23 = arith.constant 0 : index
    %c0_24 = arith.constant 0 : index
    %75 = vector.load %arg6[%c0_23, %c0_24] : memref<8x1xf32, #tpu.memory_space<vmem>>, vector<8x1xf32>
    %76 = vector.broadcast %75 : vector<8x1xf32> to vector<8x256xf32>
    %77 = arith.addf %74, %76 : vector<8x256xf32>
    %78 = arith.negf %77 : vector<8x256xf32>
    %79 = math.exp %78 : vector<8x256xf32>
    %cst_25 = arith.constant 1.000000e+00 : f32
    %80 = vector.broadcast %cst_25 : f32 to vector<8x256xf32>
    %81 = arith.addf %80, %79 : vector<8x256xf32>
    %82 = arith.divf %80, %81 : vector<8x256xf32>
    %83 = arith.mulf %77, %82 : vector<8x256xf32>
    %84 = tpu.iota {dimensions = array<i32: 0>} : vector<8x256xi32>
    %c4_i32 = arith.constant 4 : i32
    %c0_i32_26 = arith.constant 0 : i32
    %85 = arith.cmpi eq, %c4_i32, %c0_i32_26 : i32
    %c1_i32_27 = arith.constant 1 : i32
    %86 = arith.select %85, %c1_i32_27, %c4_i32 : i32
    %87 = vector.broadcast %86 : i32 to vector<8x256xi32>
    %88 = arith.remsi %84, %87 : vector<8x256xi32>
    %c0_i32_28 = arith.constant 0 : i32
    %89 = vector.broadcast %c0_i32_28 : i32 to vector<8x256xi32>
    %90 = arith.cmpi ne, %88, %89 : vector<8x256xi32>
    %c0_i32_29 = arith.constant 0 : i32
    %91 = vector.broadcast %c0_i32_29 : i32 to vector<8x256xi32>
    %92 = arith.cmpi slt, %88, %91 : vector<8x256xi32>
    %c0_i32_30 = arith.constant 0 : i32
    %93 = arith.cmpi slt, %86, %c0_i32_30 : i32
    %94 = vector.broadcast %93 : i1 to vector<8x256xi1>
    %95 = vector.broadcast %94 : vector<8x256xi1> to vector<8x256xi1>
    %96 = arith.xori %92, %95 : vector<8x256xi1>
    %97 = arith.andi %96, %90 : vector<8x256xi1>
    %98 = vector.broadcast %86 : i32 to vector<8x256xi32>
    %99 = arith.addi %88, %98 : vector<8x256xi32>
    %100 = arith.select %97, %99, %88 : vector<8x256xi1>, vector<8x256xi32>
    %101 = vector.extract_strided_slice %3 {offsets = [0, 0], sizes = [8, 1], strides = [1, 1]} : vector<8x4xf32> to vector<8x1xf32>
    %102 = vector.broadcast %101 : vector<8x1xf32> to vector<8x256xf32>
    %103 = arith.mulf %102, %83 : vector<8x256xf32>
    %c1_i32_31 = arith.constant 1 : i32
    %104 = tpu.dynamic_rotate %83 by %c1_i32_31 dim 0 : vector<8x256xf32>, i32 -> vector<8x256xf32>
    %c5_i32 = arith.constant 5 : i32
    %105 = tpu.dynamic_rotate %83 by %c5_i32 dim 0 : vector<8x256xf32>, i32 -> vector<8x256xf32>
    %106 = vector.extract_strided_slice %3 {offsets = [0, 1], sizes = [8, 1], strides = [1, 1]} : vector<8x4xf32> to vector<8x1xf32>
    %c1_i32_32 = arith.constant 1 : i32
    %107 = vector.broadcast %c1_i32_32 : i32 to vector<8x256xi32>
    %108 = arith.cmpi sge, %100, %107 : vector<8x256xi32>
    %109 = arith.select %108, %104, %105 : vector<8x256xi1>, vector<8x256xf32>
    %110 = vector.broadcast %106 : vector<8x1xf32> to vector<8x256xf32>
    %111 = arith.mulf %110, %109 : vector<8x256xf32>
    %112 = arith.addf %103, %111 : vector<8x256xf32>
    %c2_i32 = arith.constant 2 : i32
    %113 = tpu.dynamic_rotate %83 by %c2_i32 dim 0 : vector<8x256xf32>, i32 -> vector<8x256xf32>
    %c6_i32 = arith.constant 6 : i32
    %114 = tpu.dynamic_rotate %83 by %c6_i32 dim 0 : vector<8x256xf32>, i32 -> vector<8x256xf32>
    %115 = vector.extract_strided_slice %3 {offsets = [0, 2], sizes = [8, 1], strides = [1, 1]} : vector<8x4xf32> to vector<8x1xf32>
    %c2_i32_33 = arith.constant 2 : i32
    %116 = vector.broadcast %c2_i32_33 : i32 to vector<8x256xi32>
    %117 = arith.cmpi sge, %100, %116 : vector<8x256xi32>
    %118 = arith.select %117, %113, %114 : vector<8x256xi1>, vector<8x256xf32>
    %119 = vector.broadcast %115 : vector<8x1xf32> to vector<8x256xf32>
    %120 = arith.mulf %119, %118 : vector<8x256xf32>
    %121 = arith.addf %112, %120 : vector<8x256xf32>
    %c3_i32 = arith.constant 3 : i32
    %122 = tpu.dynamic_rotate %83 by %c3_i32 dim 0 : vector<8x256xf32>, i32 -> vector<8x256xf32>
    %c7_i32 = arith.constant 7 : i32
    %123 = tpu.dynamic_rotate %83 by %c7_i32 dim 0 : vector<8x256xf32>, i32 -> vector<8x256xf32>
    %124 = vector.extract_strided_slice %3 {offsets = [0, 3], sizes = [8, 1], strides = [1, 1]} : vector<8x4xf32> to vector<8x1xf32>
    %c3_i32_34 = arith.constant 3 : i32
    %125 = vector.broadcast %c3_i32_34 : i32 to vector<8x256xi32>
    %126 = arith.cmpi sge, %100, %125 : vector<8x256xi32>
    %127 = arith.select %126, %122, %123 : vector<8x256xi1>, vector<8x256xf32>
    %128 = vector.broadcast %124 : vector<8x1xf32> to vector<8x256xf32>
    %129 = arith.mulf %128, %127 : vector<8x256xf32>
    %130 = arith.addf %121, %129 : vector<8x256xf32>
    %131 = arith.addf %0, %45 : vector<8x256xf32>
    %132 = arith.addf %131, %130 : vector<8x256xf32>
    %cst_35 = arith.constant 0.000000e+00 : f32
    %133 = vector.broadcast %cst_35 : f32 to vector<8x256xf32>
    %134 = arith.maximumf %132, %133 : vector<8x256xf32>
    %c0_36 = arith.constant 0 : index
    %c0_37 = arith.constant 0 : index
    %135 = vector.load %arg8[%c0_36, %c0_37] : memref<8x256xf32, #tpu.memory_space<vmem>>, vector<8x256xf32>
    tpu.vector_store %arg8[%c0_36, %c0_37], %134 {strides = array<i32>} : memref<8x256xf32, #tpu.memory_space<vmem>>, vector<8x256xf32>,
    return
  }
  func.func @transform_0(%arg0: i32) -> (i32, i32) {
    %c0_i32 = arith.constant 0 : i32
    %c0_i32_0 = arith.constant 0 : i32
    return %arg0, %c0_i32 : i32, i32
  }
  func.func @transform_1(%arg0: i32) -> (i32, i32) {
    %c0_i32 = arith.constant 0 : i32
    %c0_i32_0 = arith.constant 0 : i32
    %c0_i32_1 = arith.constant 0 : i32
    return %c0_i32, %c0_i32_0 : i32, i32
  }
  func.func @transform_2(%arg0: i32) -> (i32, i32) {
    %c0_i32 = arith.constant 0 : i32
    %c0_i32_0 = arith.constant 0 : i32
    %c0_i32_1 = arith.constant 0 : i32
    return %c0_i32, %c0_i32_0 : i32, i32
  }
  func.func @transform_3(%arg0: i32) -> (i32, i32) {
    %c0_i32 = arith.constant 0 : i32
    %c0_i32_0 = arith.constant 0 : i32
    %c0_i32_1 = arith.constant 0 : i32
    return %c0_i32, %c0_i32_0 : i32, i32
  }
  func.func @transform_4(%arg0: i32) -> (i32, i32) {
    %c0_i32 = arith.constant 0 : i32
    %c0_i32_0 = arith.constant 0 : i32
    %c0_i32_1 = arith.constant 0 : i32
    return %c0_i32, %c0_i32_0 : i32, i32
  }
  func.func @transform_5(%arg0: i32) -> (i32, i32) {
    %c0_i32 = arith.constant 0 : i32
    %c0_i32_0 = arith.constant 0 : i32
    %c0_i32_1 = arith.constant 0 : i32
    return %c0_i32, %c0_i32_0 : i32, i32
  }
  func.func @transform_6(%arg0: i32) -> (i32, i32) {
    %c0_i32 = arith.constant 0 : i32
    %c0_i32_0 = arith.constant 0 : i32
    %c0_i32_1 = arith.constant 0 : i32
    return %c0_i32, %c0_i32_0 : i32, i32
  }
  func.func @transform_7(%arg0: i32) -> (i32, i32) {
    %c0_i32 = arith.constant 0 : i32
    %c0_i32_0 = arith.constant 0 : i32
    return %arg0, %c0_i32 : i32, i32
  }
}

</mosaic_0001>

<llo_original>
// kernel: tpu_custom_call.1
$region0: #{tpu_custom_call.1}
  #allocation0 [shape = 'u32[]', space=smem, size = 0x4, offset = 0x4, fixed_abs, tag = 'smem constant byte address 0x4 - core index']
  #allocation1 [shape = 'u32[144,128]{1,0:T(1,128)}', space=vmem, size = 0x12000, scoped, tag = 'internal scratch']
  %s0 = inlined_call_operand.vmem [shape: f32[8,256], index: 0, kind: input, shape index: {}]
  %s1 = inlined_call_operand.vmem [shape: f32[8,3], index: 1, kind: input, shape index: {}]
  %s2 = inlined_call_operand.vmem [shape: f32[8,256], index: 2, kind: input, shape index: {}]
  %s3 = inlined_call_operand.vmem [shape: f32[8,256], index: 3, kind: input, shape index: {}]
  %s4 = inlined_call_operand.vmem [shape: f32[8,3], index: 4, kind: input, shape index: {}]
  %s5 = inlined_call_operand.vmem [shape: f32[8,1], index: 5, kind: input, shape index: {}]
  %s6 = inlined_call_operand.vmem [shape: f32[8,4], index: 6, kind: input, shape index: {}]
  %s7 = inlined_call_operand.hbm [shape: f32[8,256], index: 7, kind: output, shape index: {}]
  %s8 = sld [smem:[#allocation0]]
  $region38: #{tpu_custom_call.1} parent=0
    _
  %s10 = ssub.s32 1, %s8
  %s11 = scalar_select 0, %s10, %s8
  $region1: #{tpu_custom_call.1} parent=0
    #allocation2 [shape = 'u8[8192]{0}', space=vmem, size = 0x2000, scoped, tag = 'output window, operand 0, single buffered']
    #allocation3 [shape = 's32[1]{0}', space=sflag, size = 0x4, scoped, tag = 'scoped memory for tpu_custom_call.1']
    %12 = vsyncpa [#allocation3], 0
    // Predicated region
    $region2: #{tpu_custom_call.1} parent=1 // pred_check
      _
    $region3: #{tpu_custom_call.1} parent=1 // pred_check_branch
      %14 = sbr.rel (0) target = $region5
    $region4: #{tpu_custom_call.1} parent=1 // pred_region
      _
    $region5: #{tpu_custom_call.1} parent=1 // pred_fallthru
      _
    // Predicated region
    $region6: #{tpu_custom_call.1} parent=1 // pred_check
      _
    $region7: #{tpu_custom_call.1} parent=1 // pred_check_branch
      %16 = sbr.rel (0) target = $region9
    $region8: #{tpu_custom_call.1} parent=1 // pred_region
      _
    $region9: #{tpu_custom_call.1} parent=1 // pred_fallthru
      _
    // Predicated region
    $region10: #{tpu_custom_call.1} parent=1 // pred_check
      _
    $region11: #{tpu_custom_call.1} parent=1 // pred_check_branch
      %18 = sbr.rel (0) target = $region13
    $region12: #{tpu_custom_call.1} parent=1 // pred_region
      _
    $region13: #{tpu_custom_call.1} parent=1 // pred_fallthru
      _
    // Predicated region
    $region14: #{tpu_custom_call.1} parent=1 // pred_check
      _
    $region15: #{tpu_custom_call.1} parent=1 // pred_check_branch
      %20 = sbr.rel (0) target = $region17
    $region16: #{tpu_custom_call.1} parent=1 // pred_region
      _
    $region17: #{tpu_custom_call.1} parent=1 // pred_fallthru
      _
    // Predicated region
    $region18: #{tpu_custom_call.1} parent=1 // pred_check
      _
    $region19: #{tpu_custom_call.1} parent=1 // pred_check_branch
      %22 = sbr.rel (0) target = $region21
    $region20: #{tpu_custom_call.1} parent=1 // pred_region
      _
    $region21: #{tpu_custom_call.1} parent=1 // pred_fallthru
      _
    // Predicated region
    $region22: #{tpu_custom_call.1} parent=1 // pred_check
      _
    $region23: #{tpu_custom_call.1} parent=1 // pred_check_branch
      %24 = sbr.rel (0) target = $region25
    $region24: #{tpu_custom_call.1} parent=1 // pred_region
      _
    $region25: #{tpu_custom_call.1} parent=1 // pred_fallthru
      _
    // Predicated region
    $region26: #{tpu_custom_call.1} parent=1 // pred_check
      _
    $region27: #{tpu_custom_call.1} parent=1 // pred_check_branch
      %26 = sbr.rel (0) target = $region29
    $region28: #{tpu_custom_call.1} parent=1 // pred_region
      _
    $region29: #{tpu_custom_call.1} parent=1 // pred_fallthru
      _
    %v27 = vld [vmem:[%s0] sm:$0xff]
    %v28 = vld [vmem:[%s0 + $0x8] sm:$0xff]
    %v29 = vld [vmem:[%s1] sm:$0xff]
    %v30 = vld [vmem:[%s4] sm:$0xff]
    %v31 = vld [vmem:[%s6] sm:$0xff]
    %v32 = vlaneseq
    %v33 = vand.u32 %v32, 127
    %v34 = vadd.s32 %v33, 128
    %vm35 = vcmp.lt.s32.totalorder %v33, 0
    %v36 = vsub.s32 0, %v33
    %v37 = vsel %vm35, %v36, %v33
    %v38 = vshrl.u32 %v37, 4
    %v39 = vand.u32 %v37, 15
    %v40 = vsub.s32 0, %v39
    %v41 = vsel %vm35, %v40, %v39
    %vm42 = vcmp.lt.s32.totalorder %v34, 0
    %v43 = vsub.s32 0, %v34
    %v44 = vsel %vm42, %v43, %v34
    %v45 = vshrl.u32 %v44, 4
    %v46 = vand.u32 %v44, 15
    %v47 = vsub.s32 0, %v46
    %v48 = vsel %vm42, %v47, %v46
    %vm49 = vcmp.ne.s32.totalorder %v41, 0
    %vm50 = vcmp.ne.s32.totalorder %v48, 0
    %vm51 = vcmp.lt.s32.totalorder %v41, 0
    %vm52 = vcmp.lt.s32.totalorder %v48, 0
    %vm53 = vmand %vm51, %vm49
    %vm54 = vmand %vm52, %vm50
    %v55 = vadd.s32 %v41, 16
    %v56 = vadd.s32 %v48, 16
    %v57 = vsel %vm53, %v55, %v41
    %v58 = vsel %vm54, %v56, %v48
    %60 = vset.pattern.permute.xlu0 1
    %61 = vperm.xlu0 %60, %v29
    %v62 = vpop.permute.xlu0 %61
    %v64 = vmul.f32 %v62, %v27
    %v65 = vmul.f32 %v62, %v28
    %vm66 = vcmp.ge.s32.totalorder %v33, 16
    %vm67 = vcmp.ge.s32.totalorder %v34, 16
    %68 = vrot.lane.b32.xlu0 %v27, 16
    %v69 = vpop.permute.xlu0 %68
    %70 = vrot.lane.b32.xlu0 %v28, 16
    %v71 = vpop.permute.xlu0 %70
    %vm72 = vcmp.lt.s32.totalorder %v33, 16
    %v73 = vsel %vm72, %v69, %v71
    %v74 = vsel %vm72, %v71, %v69
    %v75 = vsel %vm66, %v74, 0.0
    %v76 = vsel %vm67, %v73, 0.0
    %77 = vset.pattern.permute.xlu0 0
    %78 = vperm.xlu0 %77, %v29
    %v79 = vpop.permute.xlu0 %78
    %v81 = vmul.f32 %v79, %v75
    %v82 = vmul.f32 %v79, %v76
    %v83 = vadd.f32 %v64, %v81
    %v84 = vadd.f32 %v65, %v82
    %vm85 = vcmp.lt.s32.totalorder %v33, 240
    %vm86 = vcmp.lt.s32.totalorder %v34, 240
    %87 = vrot.lane.b32.xlu0 %v27, 112
    %v88 = vpop.permute.xlu0 %87
    %89 = vrot.lane.b32.xlu0 %v28, 112
    %v90 = vpop.permute.xlu0 %89
    %vm91 = vcmp.lt.s32.totalorder %v33, 112
    %v92 = vsel %vm91, %v88, %v90
    %v93 = vsel %vm91, %v90, %v88
    %v94 = vsel %vm85, %v92, 0.0
    %v95 = vsel %vm86, %v93, 0.0
    %96 = vset.pattern.permute.xlu0 2
    %97 = vperm.xlu0 %96, %v29
    %v98 = vpop.permute.xlu0 %97
    %v100 = vmul.f32 %v98, %v94
    %v101 = vmul.f32 %v98, %v95
    %v102 = vadd.f32 %v83, %v100
    %v103 = vadd.f32 %v84, %v101
    %v104 = vld [vmem:[%s2] sm:$0xff]
    %v105 = vld [vmem:[%s2 + $0x8] sm:$0xff]
    %v106 = vmul.f32 %v102, %v104
    %v107 = vmul.f32 %v103, %v105
    %v108 = vld [vmem:[%s3] sm:$0xff]
    %v109 = vld [vmem:[%s3 + $0x8] sm:$0xff]
    %v110 = vadd.f32 %v106, %v108
    %v111 = vadd.f32 %v107, %v109
    %112 = vrot.lane.b32.xlu0 %v110, 16
    %v113 = vpop.permute.xlu0 %112
    %114 = vrot.lane.b32.xlu0 %v111, 16
    %v115 = vpop.permute.xlu0 %114
    %v116 = vsel %vm72, %v113, %v115
    %v117 = vsel %vm72, %v115, %v113
    %v118 = vadd.f32 %v110, %v117
    %v119 = vadd.f32 %v111, %v116
    %120 = vrot.lane.b32.xlu0 %v118, 32
    %v121 = vpop.permute.xlu0 %120
    %122 = vrot.lane.b32.xlu0 %v119, 32
    %v123 = vpop.permute.xlu0 %122
    %vm124 = vcmp.lt.s32.totalorder %v33, 32
    %v125 = vsel %vm124, %v121, %v123
    %v126 = vsel %vm124, %v123, %v121
    %v127 = vadd.f32 %v118, %v126
    %v128 = vadd.f32 %v119, %v125
    %129 = vrot.lane.b32.xlu0 %v127, 64
    %v130 = vpop.permute.xlu0 %129
    %131 = vrot.lane.b32.xlu0 %v128, 64
    %v132 = vpop.permute.xlu0 %131
    %vm133 = vcmp.lt.s32.totalorder %v33, 64
    %v134 = vsel %vm133, %v130, %v132
    %v135 = vsel %vm133, %v132, %v130
    %v136 = vadd.f32 %v127, %v135
    %v137 = vadd.f32 %v128, %v134
    %v138 = vadd.f32 %v136, %v137
    %140 = vset.pattern.permute.xlu0 1
    %141 = vperm.xlu0 %140, %v30
    %v142 = vpop.permute.xlu0 %141
    %v144 = vmul.f32 %v142, %v138
    %vm145 = vcmp.ge.s32.totalorder %v57, 1
    %vm146 = vcmp.ge.s32.totalorder %v58, 1
    %147 = vrot.lane.b32.xlu0 %v138, 1
    %v148 = vpop.permute.xlu0 %147
    %v149 = vsel %vm145, %v148, 0.0
    %v150 = vsel %vm146, %v148, 0.0
    %151 = vset.pattern.permute.xlu0 0
    %152 = vperm.xlu0 %151, %v30
    %v153 = vpop.permute.xlu0 %152
    %v155 = vmul.f32 %v153, %v149
    %v156 = vmul.f32 %v153, %v150
    %v157 = vadd.f32 %v144, %v155
    %v158 = vadd.f32 %v144, %v156
    %vm159 = vcmp.lt.s32.totalorder %v57, 15
    %vm160 = vcmp.lt.s32.totalorder %v58, 15
    %161 = vrot.lane.b32.xlu0 %v138, 127
    %v162 = vpop.permute.xlu0 %161
    %v163 = vsel %vm159, %v162, 0.0
    %v164 = vsel %vm160, %v162, 0.0
    %165 = vset.pattern.permute.xlu0 2
    %166 = vperm.xlu0 %165, %v30
    %v167 = vpop.permute.xlu0 %166
    %v169 = vmul.f32 %v167, %v163
    %v170 = vmul.f32 %v167, %v164
    %v171 = vadd.f32 %v157, %v169
    %v172 = vadd.f32 %v158, %v170
    %v173 = vld [vmem:[%s5] sm:$0xff]
    %175 = vset.pattern.permute.xlu0 0
    %176 = vperm.xlu0 %175, %v173
    %v177 = vpop.permute.xlu0 %176
    %v179 = vadd.f32 %v171, %v177
    %v180 = vadd.f32 %v172, %v177
    %v181 = vxor.u32 %v179, 2147483648
    %v182 = vxor.u32 %v180, 2147483648
    %v183 = vmul.f32 %v181, 1.442695
    %v184 = vpow.pop %v183
    %v185 = vmul.f32 %v182, 1.442695
    %v186 = vpow.pop %v185
    %v187 = vadd.f32 %v184, 1.0
    %v188 = vadd.f32 %v186, 1.0
    %v189 = vrcp.pop %v187
    %v190 = vmul.f32 1.0, %v189
    %v191 = vrcp.pop %v188
    %v192 = vmul.f32 1.0, %v191
    %v193 = vmul.f32 %v179, %v190
    %v194 = vmul.f32 %v180, %v192
    %v195 = vlaneseq
    %v196 = vshrl.u32 %v195, 7
    %vm197 = vcmp.lt.s32.totalorder %v196, 0
    %v198 = vsub.s32 0, %v196
    %v199 = vsel %vm197, %v198, %v196
    %v200 = vshrl.u32 %v199, 2
    %v201 = vand.u32 %v199, 3
    %v202 = vsub.s32 0, %v201
    %v203 = vsel %vm197, %v202, %v201
    %vm204 = vcmp.ne.s32.totalorder %v203, 0
    %vm205 = vcmp.lt.s32.totalorder %v203, 0
    %vm206 = vmand %vm205, %vm204
    %v207 = vadd.s32 %v203, 4
    %v208 = vsel %vm206, %v207, %v203
    %210 = vset.pattern.permute.xlu0 0
    %211 = vperm.xlu0 %210, %v31
    %v212 = vpop.permute.xlu0 %211
    %v214 = vmul.f32 %v212, %v193
    %v215 = vmul.f32 %v212, %v194
    %v216 = vrot.slane %v193, 7
    %v217 = vrot.slane %v194, 7
    %v218 = vrot.slane %v193, 3
    %v219 = vrot.slane %v194, 3
    %vm220 = vcmp.ge.s32.totalorder %v208, 1
    %v221 = vsel %vm220, %v216, %v218
    %v222 = vsel %vm220, %v217, %v219
    %223 = vset.pattern.permute.xlu0 1
    %224 = vperm.xlu0 %223, %v31
    %v225 = vpop.permute.xlu0 %224
    %v227 = vmul.f32 %v225, %v221
    %v228 = vmul.f32 %v225, %v222
    %v229 = vadd.f32 %v214, %v227
    %v230 = vadd.f32 %v215, %v228
    %v231 = vrot.slane %v193, 6
    %v232 = vrot.slane %v194, 6
    %v233 = vrot.slane %v193, 2
    %v234 = vrot.slane %v194, 2
    %vm235 = vcmp.ge.s32.totalorder %v208, 2
    %v236 = vsel %vm235, %v231, %v233
    %v237 = vsel %vm235, %v232, %v234
    %238 = vset.pattern.permute.xlu0 2
    %239 = vperm.xlu0 %238, %v31
    %v240 = vpop.permute.xlu0 %239
    %v242 = vmul.f32 %v240, %v236
    %v243 = vmul.f32 %v240, %v237
    %v244 = vadd.f32 %v229, %v242
    %v245 = vadd.f32 %v230, %v243
    %v246 = vrot.slane %v193, 5
    %v247 = vrot.slane %v194, 5
    %v248 = vrot.slane %v193, 1
    %v249 = vrot.slane %v194, 1
    %vm250 = vcmp.ge.s32.totalorder %v208, 3
    %v251 = vsel %vm250, %v246, %v248
    %v252 = vsel %vm250, %v247, %v249
    %253 = vset.pattern.permute.xlu0 3
    %254 = vperm.xlu0 %253, %v31
    %v255 = vpop.permute.xlu0 %254
    %v257 = vmul.f32 %v255, %v251
    %v258 = vmul.f32 %v255, %v252
    %v259 = vadd.f32 %v244, %v257
    %v260 = vadd.f32 %v245, %v258
    %v261 = vadd.f32 %v27, %v110
    %v262 = vadd.f32 %v28, %v111
    %v263 = vadd.f32 %v261, %v259
    %v264 = vadd.f32 %v262, %v260
    %v265 = vmax.f32 %v263, 0.0
    %v266 = vmax.f32 %v264, 0.0
    %267 = vst [vmem:[#allocation2] sm:$0xff] %v265
    %268 = vst [vmem:[#allocation2 + $0x8] sm:$0xff] %v266
    // Predicated region
    $region30: #{tpu_custom_call.1} parent=1 // pred_check
      _
    $region31: #{tpu_custom_call.1} parent=1 // pred_check_branch
      %270 = sbr.rel (0) target = $region33
    $region32: #{tpu_custom_call.1} parent=1 // pred_region
      %s272 = ssub.s32 256, 256
      %273 = vsyncadd [#allocation3], %s272
      %s275 = sshll.u32 [#allocation2], 4
      %s276 = int_to_ptr.vmem [resolvable:$true] %s275
      %278 = dma.vmem_to_hbm [thread:$0]  %s276, 256, %s7, [#allocation3]
    $region33: #{tpu_custom_call.1} parent=1 // pred_fallthru
      _
    // Predicated region
    $region34: #{tpu_custom_call.1} parent=1 // pred_check
      _
    $region35: #{tpu_custom_call.1} parent=1 // pred_check_branch
      %280 = sbr.rel (0) target = $region37
    $region36: #{tpu_custom_call.1} parent=1 // pred_region
      %281 = dma.done [#allocation3], 256
    $region37: #{tpu_custom_call.1} parent=1 // pred_fallthru
      _
    %282 = vsyncpa [#allocation3], 1

</llo_original>
